<compile_context>
chip_gen: v6e
topology: v6e:2x2x1
jax: 0.10.0
libtpu: 0.0.40
codegen_flags: <defaults>
</compile_context>

<pallas_src>
import functools

import jax
import jax.numpy as jnp
from jax import lax
from jax.experimental import pallas as pl
from jax.experimental.pallas import tpu as pltpu


def _round_up(a, b):
    return ((a + b - 1) // b) * b


def mlp_kernel(x_ref, w1_ref, b1_ref, w2_ref, b2_ref,
               w3_ref, b3_ref, w4_ref, b4_ref, o_ref):
    # x_ref: (TILE_N, D) f32 in its native row-major layout.
    # w*_ref: (out, in) f32, VMEM-resident.  b1..b3: (out, 1) f32 VMEM.
    # b4_ref: (1,) f32 in SMEM (scalar).  o_ref: (1, TILE_N) f32 (lane-dense).
    #
    # First layer contracts the feature axis of BOTH operands (w1 @ x.T on the
    # MXU) so the result is already feature-major (64, TILE_N); every later
    # layer then stays feature-major and the final store is a full-width vst.
    h = lax.dot_general(w1_ref[...], x_ref[...],
                        dimension_numbers=(((1,), (1,)), ((), ())),
                        preferred_element_type=jnp.float32)
    h = jnp.maximum(h + b1_ref[...], 0.0)                         # (64, TILE_N)
    h = jnp.dot(w2_ref[...], h, preferred_element_type=jnp.float32)
    h = jnp.maximum(h + b2_ref[...], 0.0)                         # (32, TILE_N)
    h = jnp.dot(w3_ref[...], h, preferred_element_type=jnp.float32)
    h = jnp.maximum(h + b3_ref[...], 0.0)                         # (16, TILE_N)
    h = jnp.dot(w4_ref[...], h, preferred_element_type=jnp.float32)
    o_ref[...] = (h + b4_ref[0]).astype(o_ref.dtype)              # (1, TILE_N)


@functools.partial(jax.jit, static_argnames=("tile_n",))
def mlp_forward(x, params, tile_n=4096):
    """x: (N, input_dim) float32.  params: PyTorch nn.Linear layout
    (W: (out, in), b: (out, 1)).  Returns (N, output_dim) float32."""
    N, D = x.shape
    out_dim = params["w4"].shape[0]
    assert out_dim == 1, "regression head expected (output_dim == 1)"

    # Batch tile: large to amortize the ~0.35 us per-grid-step overhead, but
    # capped near N/2 (multiple of 256) so v7x's two TensorCores both get a
    # step on mid-size batches.  256 is a multiple of (8, 128) sublane/lane
    # granularity on every axis it is used on.
    tile = min(tile_n, _round_up(pl.cdiv(N, 2), 256))
    grid = (pl.cdiv(N, tile),)   # ragged last block handled by masked writes

    f32 = lambda k: params[k].astype(jnp.float32)
    operands = (
        x.astype(jnp.float32),
        f32("w1"), f32("b1"),
        f32("w2"), f32("b2"),
        f32("w3"), f32("b3"),
        f32("w4"),
        f32("b4").reshape(-1),   # (1,) scalar bias -> SMEM
    )

    # Weights / biases: block == full array with a constant block index, so
    # they are DMA'd once and stay VMEM-resident across all grid steps.
    resident = lambda arr: pl.BlockSpec(arr.shape, lambda i: (0, 0))
    in_specs = [pl.BlockSpec((tile, D), lambda i: (i, 0))]          # x tile
    in_specs += [resident(op) for op in operands[1:-1]]             # w1..w4,b1..b3
    in_specs += [pl.BlockSpec(memory_space=pltpu.MemorySpace.SMEM)]  # b4 scalar

    # Advisory cost: 2*K*M*N flops per layer + bias/ReLU, x + y HBM bytes + params.
    per_sample_flops = 2 * (D * 64 + 64 * 32 + 32 * 16 + 16 * out_dim) \
        + 2 * (64 + 32 + 16 + out_dim)
    param_bytes = sum(int(p.size) * 4 for p in params.values())
    cost = pl.CostEstimate(
        flops=N * per_sample_flops,
        transcendentals=0,
        bytes_accessed=N * (D + out_dim) * 4 + param_bytes)

    out = pl.pallas_call(
        mlp_kernel,
        out_shape=jax.ShapeDtypeStruct((out_dim, N), jnp.float32),
        grid=grid,
        in_specs=in_specs,
        out_specs=pl.BlockSpec((out_dim, tile), lambda i: (0, i)),
        compiler_params=pltpu.CompilerParams(
            dimension_semantics=("parallel",)),
        cost_estimate=cost,
    )(*operands)

    # (1, N) -> (N, 1): trivial layout change back to the PyTorch convention.
    return out.T


def init_params(key, input_dim, output_dim):
    """PyTorch nn.Linear layout: W (out, in), b (out, 1); U[-1/sqrt(in), 1/sqrt(in)]."""
    dims = [(input_dim, 64), (64, 32), (32, 16), (16, output_dim)]
    params = {}
    for idx, (din, dout) in enumerate(dims, start=1):
        key, kw, kb = jax.random.split(key, 3)
        bound = 1.0 / float(din) ** 0.5
        params[f"w{idx}"] = jax.random.uniform(
            kw, (dout, din), jnp.float32, minval=-bound, maxval=bound)
        params[f"b{idx}"] = jax.random.uniform(
            kb, (dout, 1), jnp.float32, minval=-bound, maxval=bound)
    return params


def reference_forward_f32(x, p):
    """Exact f32 forward matching the PyTorch module (x @ W.T + b)."""
    h = jnp.maximum(x @ p["w1"].T + p["b1"][:, 0], 0.0)
    h = jnp.maximum(h @ p["w2"].T + p["b2"][:, 0], 0.0)
    h = jnp.maximum(h @ p["w3"].T + p["b3"][:, 0], 0.0)
    return h @ p["w4"].T + p["b4"][:, 0]


if __name__ == "__main__":
    INPUT_DIM = 10    # sklearn diabetes has 10 features
    OUTPUT_DIM = 1    # regression target, y_train.shape[1] == 1

    key = jax.random.PRNGKey(0)
    key, kx_small, kx_mid = jax.random.split(key, 3)
    params = init_params(key, INPUT_DIM, OUTPUT_DIM)

    # Small batch (single grid step, tile > N, masked tail) and a mid-size
    # ragged batch (640 -> tile 512, grid=(2,), ragged second block) to
    # exercise both the resident-weight and the masked-OOB paths.
    for kx, batch in ((kx_small, 8), (kx_mid, 640)):
        x = jax.random.normal(kx, (batch, INPUT_DIM), jnp.float32)
        out = jax.block_until_ready(mlp_forward(x, params))
        assert out.shape == (batch, OUTPUT_DIM)

        ref = reference_forward_f32(x, params)
        max_err = float(jnp.max(jnp.abs(out - ref)))
        # Kernel is full f32; loose bound only hedges MXU accumulation-order /
        # pass-count differences vs the XLA reference.
        assert jnp.allclose(out, ref, atol=1e-2, rtol=1e-2), (
            "max |err| vs f32 reference:", max_err)

    print("KERNEL_OK")
</pallas_src>

<mosaic_0001>
module attributes {stable_mosaic.version = 11 : i64} {
  func.func @mlp_kernel(%arg0: i32, %arg1: memref<256x10xf32, #tpu.memory_space<vmem>>, %arg2: memref<64x10xf32, #tpu.memory_space<vmem>>, %arg3: memref<64x1xf32, #tpu.memory_space<vmem>>, %arg4: memref<32x64xf32, #tpu.memory_space<vmem>>, %arg5: memref<32x1xf32, #tpu.memory_space<vmem>>, %arg6: memref<16x32xf32, #tpu.memory_space<vmem>>, %arg7: memref<16x1xf32, #tpu.memory_space<vmem>>, %arg8: memref<1x16xf32, #tpu.memory_space<vmem>>, %arg9: memref<1xf32, #tpu.memory_space<smem>>, %arg10: memref<1x256xf32, #tpu.memory_space<vmem>>) attributes {dimension_semantics = [#tpu.dimension_semantics<parallel>], iteration_bounds = array<i64: 1>, scalar_prefetch = 0 : i64, scratch_operands = 0 : i64, tpu.core_type = #tpu.core_type<tc>, window_params = [{transform_indices = @transform_0, window_bounds = array<i64: 256, 10>}, {pipeline_mode = #tpu.pipeline_mode<synchronous>, transform_indices = @transform_1, window_bounds = array<i64: 64, 10>}, {pipeline_mode = #tpu.pipeline_mode<synchronous>, transform_indices = @transform_2, window_bounds = array<i64: 64, 1>}, {pipeline_mode = #tpu.pipeline_mode<synchronous>, transform_indices = @transform_3, window_bounds = array<i64: 32, 64>}, {pipeline_mode = #tpu.pipeline_mode<synchronous>, transform_indices = @transform_4, window_bounds = array<i64: 32, 1>}, {pipeline_mode = #tpu.pipeline_mode<synchronous>, transform_indices = @transform_5, window_bounds = array<i64: 16, 32>}, {pipeline_mode = #tpu.pipeline_mode<synchronous>, transform_indices = @transform_6, window_bounds = array<i64: 16, 1>}, {pipeline_mode = #tpu.pipeline_mode<synchronous>, transform_indices = @transform_7, window_bounds = array<i64: 1, 16>}, {transform_indices = @transform_8, window_bounds = array<i64: 1>}, {transform_indices = @transform_9, window_bounds = array<i64: 1, 256>}]} {
    %c0 = arith.constant 0 : index
    %c0_0 = arith.constant 0 : index
    %0 = vector.load %arg2[%c0, %c0_0] : memref<64x10xf32, #tpu.memory_space<vmem>>, vector<64x10xf32>
    %c0_1 = arith.constant 0 : index
    %c0_2 = arith.constant 0 : index
    %1 = vector.load %arg1[%c0_1, %c0_2] : memref<256x10xf32, #tpu.memory_space<vmem>>, vector<256x10xf32>
    %cst = arith.constant dense<0.000000e+00> : vector<64x256xf32>
    %2 = tpu.matmul %0, %1, %cst {dimension_numbers = #tpu.dot_dimension_numbers<[1], [1], [0], [0], [0, 0, 1, 0], [], []>} : vector<64x10xf32>, vector<256x10xf32>, vector<64x256xf32> -> vector<64x256xf32>
    %c0_3 = arith.constant 0 : index
    %c0_4 = arith.constant 0 : index
    %3 = vector.load %arg3[%c0_3, %c0_4] : memref<64x1xf32, #tpu.memory_space<vmem>>, vector<64x1xf32>
    %4 = vector.broadcast %3 : vector<64x1xf32> to vector<64x256xf32>
    %5 = arith.addf %2, %4 : vector<64x256xf32>
    %cst_5 = arith.constant 0.000000e+00 : f32
    %6 = vector.broadcast %cst_5 : f32 to vector<64x256xf32>
    %7 = arith.maximumf %5, %6 : vector<64x256xf32>
    %c0_6 = arith.constant 0 : index
    %c0_7 = arith.constant 0 : index
    %8 = vector.load %arg4[%c0_6, %c0_7] : memref<32x64xf32, #tpu.memory_space<vmem>>, vector<32x64xf32>
    %cst_8 = arith.constant dense<0.000000e+00> : vector<32x256xf32>
    %9 = tpu.matmul %8, %7, %cst_8 {dimension_numbers = #tpu.dot_dimension_numbers<[1], [0], [0], [1], [0, 0, 1, 1], [], []>} : vector<32x64xf32>, vector<64x256xf32>, vector<32x256xf32> -> vector<32x256xf32>
    %c0_9 = arith.constant 0 : index
    %c0_10 = arith.constant 0 : index
    %10 = vector.load %arg5[%c0_9, %c0_10] : memref<32x1xf32, #tpu.memory_space<vmem>>, vector<32x1xf32>
    %11 = vector.broadcast %10 : vector<32x1xf32> to vector<32x256xf32>
    %12 = arith.addf %9, %11 : vector<32x256xf32>
    %cst_11 = arith.constant 0.000000e+00 : f32
    %13 = vector.broadcast %cst_11 : f32 to vector<32x256xf32>
    %14 = arith.maximumf %12, %13 : vector<32x256xf32>
    %c0_12 = arith.constant 0 : index
    %c0_13 = arith.constant 0 : index
    %15 = vector.load %arg6[%c0_12, %c0_13] : memref<16x32xf32, #tpu.memory_space<vmem>>, vector<16x32xf32>
    %cst_14 = arith.constant dense<0.000000e+00> : vector<16x256xf32>
    %16 = tpu.matmul %15, %14, %cst_14 {dimension_numbers = #tpu.dot_dimension_numbers<[1], [0], [0], [1], [0, 0, 1, 1], [], []>} : vector<16x32xf32>, vector<32x256xf32>, vector<16x256xf32> -> vector<16x256xf32>
    %c0_15 = arith.constant 0 : index
    %c0_16 = arith.constant 0 : index
    %17 = vector.load %arg7[%c0_15, %c0_16] : memref<16x1xf32, #tpu.memory_space<vmem>>, vector<16x1xf32>
    %18 = vector.broadcast %17 : vector<16x1xf32> to vector<16x256xf32>
    %19 = arith.addf %16, %18 : vector<16x256xf32>
    %cst_17 = arith.constant 0.000000e+00 : f32
    %20 = vector.broadcast %cst_17 : f32 to vector<16x256xf32>
    %21 = arith.maximumf %19, %20 : vector<16x256xf32>
    %c0_18 = arith.constant 0 : index
    %c0_19 = arith.constant 0 : index
    %22 = vector.load %arg8[%c0_18, %c0_19] : memref<1x16xf32, #tpu.memory_space<vmem>>, vector<1x16xf32>
    %cst_20 = arith.constant dense<0.000000e+00> : vector<1x256xf32>
    %23 = tpu.matmul %22, %21, %cst_20 {dimension_numbers = #tpu.dot_dimension_numbers<[1], [0], [0], [1], [0, 0, 1, 1], [], []>} : vector<1x16xf32>, vector<16x256xf32>, vector<1x256xf32> -> vector<1x256xf32>
    %c0_21 = arith.constant 0 : index
    %24 = memref.load %arg9[%c0_21] : memref<1xf32, #tpu.memory_space<smem>>
    %25 = vector.broadcast %24 : f32 to vector<1x256xf32>
    %26 = arith.addf %23, %25 : vector<1x256xf32>
    %c0_22 = arith.constant 0 : index
    %c0_23 = arith.constant 0 : index
    %27 = vector.load %arg10[%c0_22, %c0_23] : memref<1x256xf32, #tpu.memory_space<vmem>>, vector<1x256xf32>
    tpu.vector_store %arg10[%c0_22, %c0_23], %26 {strides = array<i32>} : memref<1x256xf32, #tpu.memory_space<vmem>>, vector<1x256xf32>,
    return
  }
  func.func @transform_0(%arg0: i32) -> (i32, i32) {
    %c0_i32 = arith.constant 0 : i32
    %c0_i32_0 = arith.constant 0 : i32
    return %arg0, %c0_i32 : i32, i32
  }
  func.func @transform_1(%arg0: i32) -> (i32, i32) {
    %c0_i32 = arith.constant 0 : i32
    %c0_i32_0 = arith.constant 0 : i32
    %c0_i32_1 = arith.constant 0 : i32
    return %c0_i32, %c0_i32_0 : i32, i32
  }
  func.func @transform_2(%arg0: i32) -> (i32, i32) {
    %c0_i32 = arith.constant 0 : i32
    %c0_i32_0 = arith.constant 0 : i32
    %c0_i32_1 = arith.constant 0 : i32
    return %c0_i32, %c0_i32_0 : i32, i32
  }
  func.func @transform_3(%arg0: i32) -> (i32, i32) {
    %c0_i32 = arith.constant 0 : i32
    %c0_i32_0 = arith.constant 0 : i32
    %c0_i32_1 = arith.constant 0 : i32
    return %c0_i32, %c0_i32_0 : i32, i32
  }
  func.func @transform_4(%arg0: i32) -> (i32, i32) {
    %c0_i32 = arith.constant 0 : i32
    %c0_i32_0 = arith.constant 0 : i32
    %c0_i32_1 = arith.constant 0 : i32
    return %c0_i32, %c0_i32_0 : i32, i32
  }
  func.func @transform_5(%arg0: i32) -> (i32, i32) {
    %c0_i32 = arith.constant 0 : i32
    %c0_i32_0 = arith.constant 0 : i32
    %c0_i32_1 = arith.constant 0 : i32
    return %c0_i32, %c0_i32_0 : i32, i32
  }
  func.func @transform_6(%arg0: i32) -> (i32, i32) {
    %c0_i32 = arith.constant 0 : i32
    %c0_i32_0 = arith.constant 0 : i32
    %c0_i32_1 = arith.constant 0 : i32
    return %c0_i32, %c0_i32_0 : i32, i32
  }
  func.func @transform_7(%arg0: i32) -> (i32, i32) {
    %c0_i32 = arith.constant 0 : i32
    %c0_i32_0 = arith.constant 0 : i32
    %c0_i32_1 = arith.constant 0 : i32
    return %c0_i32, %c0_i32_0 : i32, i32
  }
  func.func @transform_8(%arg0: i32) -> i32 {
    %c0_i32 = arith.constant 0 : i32
    %c0_i32_0 = arith.constant 0 : i32
    return %c0_i32 : i32
  }
  func.func @transform_9(%arg0: i32) -> (i32, i32) {
    %c0_i32 = arith.constant 0 : i32
    %c0_i32_0 = arith.constant 0 : i32
    return %c0_i32, %arg0 : i32, i32
  }
}

</mosaic_0001>

<llo_original>
// kernel: mlp_forward.1
$region0: #{mlp_forward.1}
  #allocation0 [shape = 'u32[]', space=smem, size = 0x4, offset = 0x4, fixed_abs, tag = 'smem constant byte address 0x4 - core index']
  #allocation1 [shape = 'u32[144,128]{1,0:T(1,128)}', space=vmem, size = 0x12000, scoped, tag = 'internal scratch']
  #allocation2 [shape = 'f32[1]{0:T(128)S(6)}', space=smem, size = 0x200, scoped, tag = 'scoped memory for mlp_forward.1']
  %s0 = inlined_call_operand.vmem [shape: f32[8,10], index: 0, kind: input, shape index: {}]
  %s1 = inlined_call_operand.vmem [shape: f32[64,10], index: 1, kind: input, shape index: {}]
  %s2 = inlined_call_operand.vmem [shape: f32[64,1], index: 2, kind: input, shape index: {}]
  %s3 = inlined_call_operand.vmem [shape: f32[32,64], index: 3, kind: input, shape index: {}]
  %s4 = inlined_call_operand.vmem [shape: f32[32,1], index: 4, kind: input, shape index: {}]
  %s5 = inlined_call_operand.vmem [shape: f32[16,32], index: 5, kind: input, shape index: {}]
  %s6 = inlined_call_operand.vmem [shape: f32[16,1], index: 6, kind: input, shape index: {}]
  %s7 = inlined_call_operand.vmem [shape: f32[1,16], index: 7, kind: input, shape index: {}]
  %s8 = inlined_call_operand.<no memory space> [shape: f32[1], index: 8, kind: input, shape index: {}]
  %s9 = inlined_call_operand.hbm [shape: f32[1,8], index: 9, kind: output, shape index: {}]
  %s10 = sld [smem:[#allocation0]]
  $region46: #{mlp_forward.1} parent=0
    _
  %s12 = ssub.s32 1, %s10
  %s13 = scalar_select 0, %s12, %s10
  %14 = sst [smem:[#allocation2]] %s8
  $region1: #{mlp_forward.1} parent=0
    #allocation3 [shape = 'u8[1024]{0}', space=vmem, size = 0x400, scoped, tag = 'output window, operand 0, single buffered']
    #allocation4 [shape = 's32[1]{0}', space=sflag, size = 0x4, scoped, tag = 'scoped memory for mlp_forward.1']
    %15 = vsyncpa [#allocation4], 0
    // Predicated region
    $region2: #{mlp_forward.1} parent=1 // pred_check
      _
    $region3: #{mlp_forward.1} parent=1 // pred_check_branch
      %17 = sbr.rel (0) target = $region5
    $region4: #{mlp_forward.1} parent=1 // pred_region
      _
    $region5: #{mlp_forward.1} parent=1 // pred_fallthru
      _
    // Predicated region
    $region6: #{mlp_forward.1} parent=1 // pred_check
      _
    $region7: #{mlp_forward.1} parent=1 // pred_check_branch
      %19 = sbr.rel (0) target = $region9
    $region8: #{mlp_forward.1} parent=1 // pred_region
      _
    $region9: #{mlp_forward.1} parent=1 // pred_fallthru
      _
    // Predicated region
    $region10: #{mlp_forward.1} parent=1 // pred_check
      _
    $region11: #{mlp_forward.1} parent=1 // pred_check_branch
      %21 = sbr.rel (0) target = $region13
    $region12: #{mlp_forward.1} parent=1 // pred_region
      _
    $region13: #{mlp_forward.1} parent=1 // pred_fallthru
      _
    // Predicated region
    $region14: #{mlp_forward.1} parent=1 // pred_check
      _
    $region15: #{mlp_forward.1} parent=1 // pred_check_branch
      %23 = sbr.rel (0) target = $region17
    $region16: #{mlp_forward.1} parent=1 // pred_region
      _
    $region17: #{mlp_forward.1} parent=1 // pred_fallthru
      _
    // Predicated region
    $region18: #{mlp_forward.1} parent=1 // pred_check
      _
    $region19: #{mlp_forward.1} parent=1 // pred_check_branch
      %25 = sbr.rel (0) target = $region21
    $region20: #{mlp_forward.1} parent=1 // pred_region
      _
    $region21: #{mlp_forward.1} parent=1 // pred_fallthru
      _
    // Predicated region
    $region22: #{mlp_forward.1} parent=1 // pred_check
      _
    $region23: #{mlp_forward.1} parent=1 // pred_check_branch
      %27 = sbr.rel (0) target = $region25
    $region24: #{mlp_forward.1} parent=1 // pred_region
      _
    $region25: #{mlp_forward.1} parent=1 // pred_fallthru
      _
    // Predicated region
    $region26: #{mlp_forward.1} parent=1 // pred_check
      _
    $region27: #{mlp_forward.1} parent=1 // pred_check_branch
      %29 = sbr.rel (0) target = $region29
    $region28: #{mlp_forward.1} parent=1 // pred_region
      _
    $region29: #{mlp_forward.1} parent=1 // pred_fallthru
      _
    // Predicated region
    $region30: #{mlp_forward.1} parent=1 // pred_check
      _
    $region31: #{mlp_forward.1} parent=1 // pred_check_branch
      %31 = sbr.rel (0) target = $region33
    $region32: #{mlp_forward.1} parent=1 // pred_region
      _
    $region33: #{mlp_forward.1} parent=1 // pred_fallthru
      _
    // Predicated region
    $region34: #{mlp_forward.1} parent=1 // pred_check
      _
    $region35: #{mlp_forward.1} parent=1 // pred_check_branch
      %33 = sbr.rel (0) target = $region37
    $region36: #{mlp_forward.1} parent=1 // pred_region
      _
    $region37: #{mlp_forward.1} parent=1 // pred_fallthru
      _
    %v34 = vld [vmem:[%s1] sm:$0xff]
    %v35 = vld [vmem:[%s1 + $0x8] sm:$0xff]
    %v36 = vld [vmem:[%s1 + $0x10] sm:$0xff]
    %v37 = vld [vmem:[%s1 + $0x18] sm:$0xff]
    %v38 = vld [vmem:[%s1 + $0x20] sm:$0xff]
    %v39 = vld [vmem:[%s1 + $0x28] sm:$0xff]
    %v40 = vld [vmem:[%s1 + $0x30] sm:$0xff]
    %v41 = vld [vmem:[%s1 + $0x38] sm:$0xff]
    %v42 = vld [vmem:[%s0] sm:$0xff]
    %v43 = vld [vmem:[%s0 + $0x8] sm:$0xff]
    %v44 = vld [vmem:[%s0 + $0x10] sm:$0xff]
    %v45 = vld [vmem:[%s0 + $0x18] sm:$0xff]
    %v46 = vld [vmem:[%s0 + $0x20] sm:$0xff]
    %v47 = vld [vmem:[%s0 + $0x28] sm:$0xff]
    %v48 = vld [vmem:[%s0 + $0x30] sm:$0xff]
    %v49 = vld [vmem:[%s0 + $0x38] sm:$0xff]
    %v50 = vld [vmem:[%s0 + $0x40] sm:$0xff]
    %v51 = vld [vmem:[%s0 + $0x48] sm:$0xff]
    %v52 = vld [vmem:[%s0 + $0x50] sm:$0xff]
    %v53 = vld [vmem:[%s0 + $0x58] sm:$0xff]
    %v54 = vld [vmem:[%s0 + $0x60] sm:$0xff]
    %v55 = vld [vmem:[%s0 + $0x68] sm:$0xff]
    %v56 = vld [vmem:[%s0 + $0x70] sm:$0xff]
    %v57 = vld [vmem:[%s0 + $0x78] sm:$0xff]
    %v58 = vld [vmem:[%s0 + $0x80] sm:$0xff]
    %v59 = vld [vmem:[%s0 + $0x88] sm:$0xff]
    %v60 = vld [vmem:[%s0 + $0x90] sm:$0xff]
    %v61 = vld [vmem:[%s0 + $0x98] sm:$0xff]
    %v62 = vld [vmem:[%s0 + $0xa0] sm:$0xff]
    %v63 = vld [vmem:[%s0 + $0xa8] sm:$0xff]
    %v64 = vld [vmem:[%s0 + $0xb0] sm:$0xff]
    %v65 = vld [vmem:[%s0 + $0xb8] sm:$0xff]
    %v66 = vld [vmem:[%s0 + $0xc0] sm:$0xff]
    %v67 = vld [vmem:[%s0 + $0xc8] sm:$0xff]
    %v68 = vld [vmem:[%s0 + $0xd0] sm:$0xff]
    %v69 = vld [vmem:[%s0 + $0xd8] sm:$0xff]
    %v70 = vld [vmem:[%s0 + $0xe0] sm:$0xff]
    %v71 = vld [vmem:[%s0 + $0xe8] sm:$0xff]
    %v72 = vld [vmem:[%s0 + $0xf0] sm:$0xff]
    %v73 = vld [vmem:[%s0 + $0xf8] sm:$0xff]
    %v74 = vld [vmem:[%s2] sm:$0xff]
    %v75 = vld [vmem:[%s2 + $0x8] sm:$0xff]
    %v76 = vld [vmem:[%s2 + $0x10] sm:$0xff]
    %v77 = vld [vmem:[%s2 + $0x18] sm:$0xff]
    %v78 = vld [vmem:[%s2 + $0x20] sm:$0xff]
    %v79 = vld [vmem:[%s2 + $0x28] sm:$0xff]
    %v80 = vld [vmem:[%s2 + $0x30] sm:$0xff]
    %v81 = vld [vmem:[%s2 + $0x38] sm:$0xff]
    %83 = vset.pattern.permute.xlu0 0
    %84 = vperm.xlu0 %83, %v74
    %v85 = vpop.permute.xlu0 %84
    %88 = vset.pattern.permute.xlu0 0
    %89 = vperm.xlu0 %88, %v75
    %v90 = vpop.permute.xlu0 %89
    %93 = vset.pattern.permute.xlu0 0
    %94 = vperm.xlu0 %93, %v76
    %v95 = vpop.permute.xlu0 %94
    %98 = vset.pattern.permute.xlu0 0
    %99 = vperm.xlu0 %98, %v77
    %v100 = vpop.permute.xlu0 %99
    %103 = vset.pattern.permute.xlu0 0
    %104 = vperm.xlu0 %103, %v78
    %v105 = vpop.permute.xlu0 %104
    %108 = vset.pattern.permute.xlu0 0
    %109 = vperm.xlu0 %108, %v79
    %v110 = vpop.permute.xlu0 %109
    %113 = vset.pattern.permute.xlu0 0
    %114 = vperm.xlu0 %113, %v80
    %v115 = vpop.permute.xlu0 %114
    %118 = vset.pattern.permute.xlu0 0
    %119 = vperm.xlu0 %118, %v81
    %v120 = vpop.permute.xlu0 %119
    %vm122 = vcmask 80896
    %v124 = vsel %vm122, %v34, 0
    %v127 = vsel %vm122, %v35, 0
    %v130 = vsel %vm122, %v36, 0
    %v133 = vsel %vm122, %v37, 0
    %v136 = vsel %vm122, %v38, 0
    %v139 = vsel %vm122, %v39, 0
    %v142 = vsel %vm122, %v40, 0
    %v145 = vsel %vm122, %v41, 0
    %v148 = vsel %vm122, %v42, 0
    %v151 = vsel %vm122, %v43, 0
    %v154 = vsel %vm122, %v44, 0
    %v157 = vsel %vm122, %v45, 0
    %v160 = vsel %vm122, %v46, 0
    %v163 = vsel %vm122, %v47, 0
    %v166 = vsel %vm122, %v48, 0
    %v169 = vsel %vm122, %v49, 0
    %v172 = vsel %vm122, %v50, 0
    %v175 = vsel %vm122, %v51, 0
    %v178 = vsel %vm122, %v52, 0
    %v181 = vsel %vm122, %v53, 0
    %v184 = vsel %vm122, %v54, 0
    %v187 = vsel %vm122, %v55, 0
    %v190 = vsel %vm122, %v56, 0
    %v193 = vsel %vm122, %v57, 0
    %v196 = vsel %vm122, %v58, 0
    %v199 = vsel %vm122, %v59, 0
    %v202 = vsel %vm122, %v60, 0
    %v205 = vsel %vm122, %v61, 0
    %v208 = vsel %vm122, %v62, 0
    %v211 = vsel %vm122, %v63, 0
    %v214 = vsel %vm122, %v64, 0
    %v217 = vsel %vm122, %v65, 0
    %v220 = vsel %vm122, %v66, 0
    %v223 = vsel %vm122, %v67, 0
    %v226 = vsel %vm122, %v68, 0
    %v229 = vsel %vm122, %v69, 0
    %v232 = vsel %vm122, %v70, 0
    %v235 = vsel %vm122, %v71, 0
    %v238 = vsel %vm122, %v72, 0
    %v241 = vsel %vm122, %v73, 0
    %243 = vmatprep.subr.mxu0 0.0
    %244 = vmatpush1.xpose.msra.mxu0 %v193
    %245 = vmatprep.subr.mxu0 0.0
    %246 = vmatpush1.xpose.msra.mxu0 %v190
    %247 = vmatprep.subr.mxu0 0.0
    %248 = vmatpush1.xpose.msra.mxu0 %v187
    %249 = vmatprep.subr.mxu0 0.0
    %250 = vmatpush1.xpose.msra.mxu0 %v184
    %251 = vmatprep.subr.mxu0 0.0
    %252 = vmatpush1.xpose.msra.mxu0 %v181
    %253 = vmatprep.subr.mxu0 0.0
    %254 = vmatpush1.xpose.msra.mxu0 %v178
    %255 = vmatprep.subr.mxu0 0.0
    %256 = vmatpush1.xpose.msra.mxu0 %v175
    %257 = vmatprep.subr.mxu0 0.0
    %258 = vmatpush1.xpose.msra.mxu0 %v172
    %259 = vmatprep.subr.mxu0 0.0
    %260 = vmatpush1.xpose.msra.mxu0 %v169
    %261 = vmatprep.subr.mxu0 0.0
    %262 = vmatpush1.xpose.msra.mxu0 %v166
    %263 = vmatprep.subr.mxu0 0.0
    %264 = vmatpush1.xpose.msra.mxu0 %v163
    %265 = vmatprep.subr.mxu0 0.0
    %266 = vmatpush1.xpose.msra.mxu0 %v160
    %267 = vmatprep.subr.mxu0 0.0
    %268 = vmatpush1.xpose.msra.mxu0 %v157
    %269 = vmatprep.subr.mxu0 0.0
    %270 = vmatpush1.xpose.msra.mxu0 %v154
    %271 = vmatprep.subr.mxu0 0.0
    %272 = vmatpush1.xpose.msra.mxu0 %v151
    %273 = vmatprep.subr.mxu0 0.0
    %274 = vmatpush1.xpose.msra.mxu0 %v148
    %275 = vmatprep.subr.mxu0 0.0
    %276 = vmatpush2.xpose.msra.mxu0 %v241
    %277 = vmatprep.subr.mxu0 0.0
    %278 = vmatpush2.xpose.msra.mxu0 %v238
    %279 = vmatprep.subr.mxu0 0.0
    %280 = vmatpush2.xpose.msra.mxu0 %v235
    %281 = vmatprep.subr.mxu0 0.0
    %282 = vmatpush2.xpose.msra.mxu0 %v232
    %283 = vmatprep.subr.mxu0 0.0
    %284 = vmatpush2.xpose.msra.mxu0 %v229
    %285 = vmatprep.subr.mxu0 0.0
    %286 = vmatpush2.xpose.msra.mxu0 %v226
    %287 = vmatprep.subr.mxu0 0.0
    %288 = vmatpush2.xpose.msra.mxu0 %v223
    %289 = vmatprep.subr.mxu0 0.0
    %290 = vmatpush2.xpose.msra.mxu0 %v220
    %291 = vmatprep.subr.mxu0 0.0
    %292 = vmatpush2.xpose.msra.mxu0 %v217
    %293 = vmatprep.subr.mxu0 0.0
    %294 = vmatpush2.xpose.msra.mxu0 %v214
    %295 = vmatprep.subr.mxu0 0.0
    %296 = vmatpush2.xpose.msra.mxu0 %v211
    %297 = vmatprep.subr.mxu0 0.0
    %298 = vmatpush2.xpose.msra.mxu0 %v208
    %299 = vmatprep.subr.mxu0 0.0
    %300 = vmatpush2.xpose.msra.mxu0 %v205
    %301 = vmatprep.subr.mxu0 0.0
    %302 = vmatpush2.xpose.msra.mxu0 %v202
    %303 = vmatprep.subr.mxu0 0.0
    %304 = vmatpush2.xpose.msra.mxu0 %v199
    %305 = vmatprep.subr.mxu0 0.0
    %306 = vmatpush2.xpose.msra.mxu0 %v196
    %307 = vmatprep.mubr.f32.mxu0 0.0
    %308 = vmatmul.mubr.f32.gmra.mxu0 %v124
    %v309 = vpop.f32.mrf.mxu0
    %v310 = vadd.f32 %v85, %v309
    %v311 = vpop.f32.mrf.mxu0
    %v312 = vadd.f32 %v85, %v311
    %313 = vmatprep.mubr.f32.mxu0 0.0
    %314 = vmatmul.mubr.f32.gmra.mxu0 %v127
    %v315 = vpop.f32.mrf.mxu0
    %v316 = vadd.f32 %v90, %v315
    %v317 = vpop.f32.mrf.mxu0
    %v318 = vadd.f32 %v90, %v317
    %319 = vmatprep.mubr.f32.mxu0 0.0
    %320 = vmatmul.mubr.f32.gmra.mxu0 %v130
    %v321 = vpop.f32.mrf.mxu0
    %v322 = vadd.f32 %v95, %v321
    %v323 = vpop.f32.mrf.mxu0
    %v324 = vadd.f32 %v95, %v323
    %325 = vmatprep.mubr.f32.mxu0 0.0
    %326 = vmatmul.mubr.f32.gmra.mxu0 %v133
    %v327 = vpop.f32.mrf.mxu0
    %v328 = vadd.f32 %v100, %v327
    %v329 = vpop.f32.mrf.mxu0
    %v330 = vadd.f32 %v100, %v329
    %331 = vmatprep.mubr.f32.mxu0 0.0
    %332 = vmatmul.mubr.f32.gmra.mxu0 %v136
    %v333 = vpop.f32.mrf.mxu0
    %v334 = vadd.f32 %v105, %v333
    %v335 = vpop.f32.mrf.mxu0
    %v336 = vadd.f32 %v105, %v335
    %337 = vmatprep.mubr.f32.mxu0 0.0
    %338 = vmatmul.mubr.f32.gmra.mxu0 %v139
    %v339 = vpop.f32.mrf.mxu0
    %v340 = vadd.f32 %v110, %v339
    %v341 = vpop.f32.mrf.mxu0
    %v342 = vadd.f32 %v110, %v341
    %343 = vmatprep.mubr.f32.mxu0 0.0
    %344 = vmatmul.mubr.f32.gmra.mxu0 %v142
    %v345 = vpop.f32.mrf.mxu0
    %v346 = vadd.f32 %v115, %v345
    %v347 = vpop.f32.mrf.mxu0
    %v348 = vadd.f32 %v115, %v347
    %349 = vmatprep.mubr.f32.mxu0 0.0
    %350 = vmatmul.mubr.f32.gmra.mxu0 %v145
    %v351 = vpop.f32.mrf.mxu0
    %v352 = vadd.f32 %v120, %v351
    %v353 = vpop.f32.mrf.mxu0
    %v354 = vadd.f32 %v120, %v353
    %355 = vdwg.mxu0
    %v356 = vmax.f32 %v310, 0.0
    %v357 = vmax.f32 %v312, 0.0
    %v358 = vmax.f32 %v316, 0.0
    %v359 = vmax.f32 %v318, 0.0
    %v360 = vmax.f32 %v322, 0.0
    %v361 = vmax.f32 %v324, 0.0
    %v362 = vmax.f32 %v328, 0.0
    %v363 = vmax.f32 %v330, 0.0
    %v364 = vmax.f32 %v334, 0.0
    %v365 = vmax.f32 %v336, 0.0
    %v366 = vmax.f32 %v340, 0.0
    %v367 = vmax.f32 %v342, 0.0
    %v368 = vmax.f32 %v346, 0.0
    %v369 = vmax.f32 %v348, 0.0
    %v370 = vmax.f32 %v352, 0.0
    %v371 = vmax.f32 %v354, 0.0
    %v372 = vld [vmem:[%s3] sm:$0xff]
    %v373 = vld [vmem:[%s3 + $0x8] sm:$0xff]
    %v374 = vld [vmem:[%s3 + $0x10] sm:$0xff]
    %v375 = vld [vmem:[%s3 + $0x18] sm:$0xff]
    %v376 = vld [vmem:[%s4] sm:$0xff]
    %v377 = vld [vmem:[%s4 + $0x8] sm:$0xff]
    %v378 = vld [vmem:[%s4 + $0x10] sm:$0xff]
    %v379 = vld [vmem:[%s4 + $0x18] sm:$0xff]
    %381 = vset.pattern.permute.xlu0 0
    %382 = vperm.xlu0 %381, %v376
    %v383 = vpop.permute.xlu0 %382
    %386 = vset.pattern.permute.xlu0 0
    %387 = vperm.xlu0 %386, %v377
    %v388 = vpop.permute.xlu0 %387
    %391 = vset.pattern.permute.xlu0 0
    %392 = vperm.xlu0 %391, %v378
    %v393 = vpop.permute.xlu0 %392
    %396 = vset.pattern.permute.xlu0 0
    %397 = vperm.xlu0 %396, %v379
    %v398 = vpop.permute.xlu0 %397
    %vm400 = vcmask 523264
    %v402 = vsel %vm400, %v372, 0
    %v405 = vsel %vm400, %v373, 0
    %v408 = vsel %vm400, %v374, 0
    %v411 = vsel %vm400, %v375, 0
    %413 = vmatprep.subr.mxu0 0.0
    %414 = vmatpush1.msra.mxu0 0.0
    %415 = vmatprep.subr.mxu0 0.0
    %416 = vmatpush1.msra.mxu0 0.0
    %417 = vmatprep.subr.mxu0 0.0
    %418 = vmatpush1.msra.mxu0 0.0
    %419 = vmatprep.subr.mxu0 0.0
    %420 = vmatpush1.msra.mxu0 0.0
    %421 = vmatprep.subr.mxu0 0.0
    %422 = vmatpush1.msra.mxu0 0.0
    %423 = vmatprep.subr.mxu0 0.0
    %424 = vmatpush1.msra.mxu0 0.0
    %425 = vmatprep.subr.mxu0 0.0
    %426 = vmatpush1.msra.mxu0 0.0
    %427 = vmatprep.subr.mxu0 0.0
    %428 = vmatpush1.msra.mxu0 0.0
    %429 = vmatprep.subr.mxu0 %v371
    %430 = vmatpush1.msra.mxu0 %v370
    %431 = vmatprep.subr.mxu0 %v369
    %432 = vmatpush1.msra.mxu0 %v368
    %433 = vmatprep.subr.mxu0 %v367
    %434 = vmatpush1.msra.mxu0 %v366
    %435 = vmatprep.subr.mxu0 %v365
    %436 = vmatpush1.msra.mxu0 %v364
    %437 = vmatprep.subr.mxu0 %v363
    %438 = vmatpush1.msra.mxu0 %v362
    %439 = vmatprep.subr.mxu0 %v361
    %440 = vmatpush1.msra.mxu0 %v360
    %441 = vmatprep.subr.mxu0 %v359
    %442 = vmatpush1.msra.mxu0 %v358
    %443 = vmatprep.subr.mxu0 %v357
    %444 = vmatpush1.msra.mxu0 %v356
    %445 = vmatprep.subr.mxu0 0.0
    %446 = vmatpush2.msra.mxu0 0.0
    %447 = vmatprep.subr.mxu0 0.0
    %448 = vmatpush2.msra.mxu0 0.0
    %449 = vmatprep.subr.mxu0 0.0
    %450 = vmatpush2.msra.mxu0 0.0
    %451 = vmatprep.subr.mxu0 0.0
    %452 = vmatpush2.msra.mxu0 0.0
    %453 = vmatprep.subr.mxu0 0.0
    %454 = vmatpush2.msra.mxu0 0.0
    %455 = vmatprep.subr.mxu0 0.0
    %456 = vmatpush2.msra.mxu0 0.0
    %457 = vmatprep.subr.mxu0 0.0
    %458 = vmatpush2.msra.mxu0 0.0
    %459 = vmatprep.subr.mxu0 0.0
    %460 = vmatpush2.msra.mxu0 0.0
    %461 = vmatprep.subr.mxu0 0.0
    %462 = vmatpush2.msra.mxu0 0.0
    %463 = vmatprep.subr.mxu0 0.0
    %464 = vmatpush2.msra.mxu0 0.0
    %465 = vmatprep.subr.mxu0 0.0
    %466 = vmatpush2.msra.mxu0 0.0
    %467 = vmatprep.subr.mxu0 0.0
    %468 = vmatpush2.msra.mxu0 0.0
    %469 = vmatprep.subr.mxu0 0.0
    %470 = vmatpush2.msra.mxu0 0.0
    %471 = vmatprep.subr.mxu0 0.0
    %472 = vmatpush2.msra.mxu0 0.0
    %473 = vmatprep.subr.mxu0 0.0
    %474 = vmatpush2.msra.mxu0 0.0
    %475 = vmatprep.subr.mxu0 0.0
    %476 = vmatpush2.msra.mxu0 0.0
    %477 = vmatprep.mubr.f32.mxu0 0.0
    %478 = vmatmul.mubr.f32.gmra.mxu0 %v402
    %v479 = vpop.f32.mrf.mxu0
    %v480 = vadd.f32 %v383, %v479
    %v481 = vpop.f32.mrf.mxu0
    %v482 = vadd.f32 %v383, %v481
    %483 = vmatprep.mubr.f32.mxu0 0.0
    %484 = vmatmul.mubr.f32.gmra.mxu0 %v405
    %v485 = vpop.f32.mrf.mxu0
    %v486 = vadd.f32 %v388, %v485
    %v487 = vpop.f32.mrf.mxu0
    %v488 = vadd.f32 %v388, %v487
    %489 = vmatprep.mubr.f32.mxu0 0.0
    %490 = vmatmul.mubr.f32.gmra.mxu0 %v408
    %v491 = vpop.f32.mrf.mxu0
    %v492 = vadd.f32 %v393, %v491
    %v493 = vpop.f32.mrf.mxu0
    %v494 = vadd.f32 %v393, %v493
    %495 = vmatprep.mubr.f32.mxu0 0.0
    %496 = vmatmul.mubr.f32.gmra.mxu0 %v411
    %v497 = vpop.f32.mrf.mxu0
    %v498 = vadd.f32 %v398, %v497
    %v499 = vpop.f32.mrf.mxu0
    %v500 = vadd.f32 %v398, %v499
    %501 = vdwg.mxu0
    %v502 = vmax.f32 %v480, 0.0
    %v503 = vmax.f32 %v482, 0.0
    %v504 = vmax.f32 %v486, 0.0
    %v505 = vmax.f32 %v488, 0.0
    %v506 = vmax.f32 %v492, 0.0
    %v507 = vmax.f32 %v494, 0.0
    %v508 = vmax.f32 %v498, 0.0
    %v509 = vmax.f32 %v500, 0.0
    %v510 = vld [vmem:[%s5] sm:$0xff]
    %v511 = vld [vmem:[%s5 + $0x8] sm:$0xff]
    %v512 = vld [vmem:[%s6] sm:$0xff]
    %v513 = vld [vmem:[%s6 + $0x8] sm:$0xff]
    %515 = vset.pattern.permute.xlu0 0
    %516 = vperm.xlu0 %515, %v512
    %v517 = vpop.permute.xlu0 %516
    %520 = vset.pattern.permute.xlu0 0
    %521 = vperm.xlu0 %520, %v513
    %v522 = vpop.permute.xlu0 %521
    %vm524 = vcmask 261120
    %v526 = vsel %vm524, %v510, 0
    %v529 = vsel %vm524, %v511, 0
    %531 = vmatprep.subr.mxu0 0.0
    %532 = vmatpush1.msra.mxu0 0.0
    %533 = vmatprep.subr.mxu0 0.0
    %534 = vmatpush1.msra.mxu0 0.0
    %535 = vmatprep.subr.mxu0 0.0
    %536 = vmatpush1.msra.mxu0 0.0
    %537 = vmatprep.subr.mxu0 0.0
    %538 = vmatpush1.msra.mxu0 0.0
    %539 = vmatprep.subr.mxu0 0.0
    %540 = vmatpush1.msra.mxu0 0.0
    %541 = vmatprep.subr.mxu0 0.0
    %542 = vmatpush1.msra.mxu0 0.0
    %543 = vmatprep.subr.mxu0 0.0
    %544 = vmatpush1.msra.mxu0 0.0
    %545 = vmatprep.subr.mxu0 0.0
    %546 = vmatpush1.msra.mxu0 0.0
    %547 = vmatprep.subr.mxu0 0.0
    %548 = vmatpush1.msra.mxu0 0.0
    %549 = vmatprep.subr.mxu0 0.0
    %550 = vmatpush1.msra.mxu0 0.0
    %551 = vmatprep.subr.mxu0 0.0
    %552 = vmatpush1.msra.mxu0 0.0
    %553 = vmatprep.subr.mxu0 0.0
    %554 = vmatpush1.msra.mxu0 0.0
    %555 = vmatprep.subr.mxu0 %v509
    %556 = vmatpush1.msra.mxu0 %v508
    %557 = vmatprep.subr.mxu0 %v507
    %558 = vmatpush1.msra.mxu0 %v506
    %559 = vmatprep.subr.mxu0 %v505
    %560 = vmatpush1.msra.mxu0 %v504
    %561 = vmatprep.subr.mxu0 %v503
    %562 = vmatpush1.msra.mxu0 %v502
    %563 = vmatprep.subr.mxu0 0.0
    %564 = vmatpush2.msra.mxu0 0.0
    %565 = vmatprep.subr.mxu0 0.0
    %566 = vmatpush2.msra.mxu0 0.0
    %567 = vmatprep.subr.mxu0 0.0
    %568 = vmatpush2.msra.mxu0 0.0
    %569 = vmatprep.subr.mxu0 0.0
    %570 = vmatpush2.msra.mxu0 0.0
    %571 = vmatprep.subr.mxu0 0.0
    %572 = vmatpush2.msra.mxu0 0.0
    %573 = vmatprep.subr.mxu0 0.0
    %574 = vmatpush2.msra.mxu0 0.0
    %575 = vmatprep.subr.mxu0 0.0
    %576 = vmatpush2.msra.mxu0 0.0
    %577 = vmatprep.subr.mxu0 0.0
    %578 = vmatpush2.msra.mxu0 0.0
    %579 = vmatprep.subr.mxu0 0.0
    %580 = vmatpush2.msra.mxu0 0.0
    %581 = vmatprep.subr.mxu0 0.0
    %582 = vmatpush2.msra.mxu0 0.0
    %583 = vmatprep.subr.mxu0 0.0
    %584 = vmatpush2.msra.mxu0 0.0
    %585 = vmatprep.subr.mxu0 0.0
    %586 = vmatpush2.msra.mxu0 0.0
    %587 = vmatprep.subr.mxu0 0.0
    %588 = vmatpush2.msra.mxu0 0.0
    %589 = vmatprep.subr.mxu0 0.0
    %590 = vmatpush2.msra.mxu0 0.0
    %591 = vmatprep.subr.mxu0 0.0
    %592 = vmatpush2.msra.mxu0 0.0
    %593 = vmatprep.subr.mxu0 0.0
    %594 = vmatpush2.msra.mxu0 0.0
    %595 = vmatprep.mubr.f32.mxu0 0.0
    %596 = vmatmul.mubr.f32.gmra.mxu0 %v526
    %v597 = vpop.f32.mrf.mxu0
    %v598 = vadd.f32 %v517, %v597
    %v599 = vpop.f32.mrf.mxu0
    %v600 = vadd.f32 %v517, %v599
    %601 = vmatprep.mubr.f32.mxu0 0.0
    %602 = vmatmul.mubr.f32.gmra.mxu0 %v529
    %v603 = vpop.f32.mrf.mxu0
    %v604 = vadd.f32 %v522, %v603
    %v605 = vpop.f32.mrf.mxu0
    %v606 = vadd.f32 %v522, %v605
    %607 = vdwg.mxu0
    %v608 = vmax.f32 %v598, 0.0
    %v609 = vmax.f32 %v600, 0.0
    %v610 = vmax.f32 %v604, 0.0
    %v611 = vmax.f32 %v606, 0.0
    %v612 = vld [vmem:[%s7] sm:$0x1]
    %s613 = sld [smem:[#allocation2]]
    %v614 = vstv %s613
    %vm615 = vcmask 130048
    %v617 = vsel %vm615, %v612, 0
    %619 = vmatprep.subr.mxu0 0.0
    %620 = vmatpush1.msra.mxu0 0.0
    %621 = vmatprep.subr.mxu0 0.0
    %622 = vmatpush1.msra.mxu0 0.0
    %623 = vmatprep.subr.mxu0 0.0
    %624 = vmatpush1.msra.mxu0 0.0
    %625 = vmatprep.subr.mxu0 0.0
    %626 = vmatpush1.msra.mxu0 0.0
    %627 = vmatprep.subr.mxu0 0.0
    %628 = vmatpush1.msra.mxu0 0.0
    %629 = vmatprep.subr.mxu0 0.0
    %630 = vmatpush1.msra.mxu0 0.0
    %631 = vmatprep.subr.mxu0 0.0
    %632 = vmatpush1.msra.mxu0 0.0
    %633 = vmatprep.subr.mxu0 0.0
    %634 = vmatpush1.msra.mxu0 0.0
    %635 = vmatprep.subr.mxu0 0.0
    %636 = vmatpush1.msra.mxu0 0.0
    %637 = vmatprep.subr.mxu0 0.0
    %638 = vmatpush1.msra.mxu0 0.0
    %639 = vmatprep.subr.mxu0 0.0
    %640 = vmatpush1.msra.mxu0 0.0
    %641 = vmatprep.subr.mxu0 0.0
    %642 = vmatpush1.msra.mxu0 0.0
    %643 = vmatprep.subr.mxu0 0.0
    %644 = vmatpush1.msra.mxu0 0.0
    %645 = vmatprep.subr.mxu0 0.0
    %646 = vmatpush1.msra.mxu0 0.0
    %647 = vmatprep.subr.mxu0 %v611
    %648 = vmatpush1.msra.mxu0 %v610
    %649 = vmatprep.subr.mxu0 %v609
    %650 = vmatpush1.msra.mxu0 %v608
    %651 = vmatprep.subr.mxu0 0.0
    %652 = vmatpush2.msra.mxu0 0.0
    %653 = vmatprep.subr.mxu0 0.0
    %654 = vmatpush2.msra.mxu0 0.0
    %655 = vmatprep.subr.mxu0 0.0
    %656 = vmatpush2.msra.mxu0 0.0
    %657 = vmatprep.subr.mxu0 0.0
    %658 = vmatpush2.msra.mxu0 0.0
    %659 = vmatprep.subr.mxu0 0.0
    %660 = vmatpush2.msra.mxu0 0.0
    %661 = vmatprep.subr.mxu0 0.0
    %662 = vmatpush2.msra.mxu0 0.0
    %663 = vmatprep.subr.mxu0 0.0
    %664 = vmatpush2.msra.mxu0 0.0
    %665 = vmatprep.subr.mxu0 0.0
    %666 = vmatpush2.msra.mxu0 0.0
    %667 = vmatprep.subr.mxu0 0.0
    %668 = vmatpush2.msra.mxu0 0.0
    %669 = vmatprep.subr.mxu0 0.0
    %670 = vmatpush2.msra.mxu0 0.0
    %671 = vmatprep.subr.mxu0 0.0
    %672 = vmatpush2.msra.mxu0 0.0
    %673 = vmatprep.subr.mxu0 0.0
    %674 = vmatpush2.msra.mxu0 0.0
    %675 = vmatprep.subr.mxu0 0.0
    %676 = vmatpush2.msra.mxu0 0.0
    %677 = vmatprep.subr.mxu0 0.0
    %678 = vmatpush2.msra.mxu0 0.0
    %679 = vmatprep.subr.mxu0 0.0
    %680 = vmatpush2.msra.mxu0 0.0
    %681 = vmatprep.subr.mxu0 0.0
    %682 = vmatpush2.msra.mxu0 0.0
    %683 = vmatprep.mubr.f32.mxu0 0.0
    %684 = vmatmul.mubr.f32.gmra.mxu0 %v617
    %v685 = vpop.f32.mrf.mxu0
    %v686 = vadd.f32 %v614, %v685
    %v687 = vpop.f32.mrf.mxu0
    %v688 = vadd.f32 %v614, %v687
    %689 = vdwg.mxu0
    %v692 = vcombine.low %v686, %v688
    %v694 = vunpack.c.l.s4 1966171168
    %v695 = vunpack.c.0.s8 %v694
    %v696 = vlaneseq
    %v697 = vshrl.u32 %v696, 7
    %v698 = vsub.s32 %v695, %v697
    %v699 = vrot.slane %v692, %v698
    %v701 = vunpack.c.l.s4 1966171168
    %v702 = vunpack.c.0.s8 %v701
    %v703 = vlaneseq
    %v704 = vshrl.u32 %v703, 7
    %v705 = vsub.s32 %v702, %v704
    %v706 = vrot.slane %v699, %v705
    %v708 = vlaneseq
    %vm709 = vcmp.ge.s32.totalorder %v708, 0
    %vm710 = vcmp.lt.s32.totalorder %v708, 256
    %vm711 = vmand %vm709, %vm710
    %712 = vst.msk [vmem:[#allocation3] sm:$0x3] %vm711, %v706
    // Predicated region
    $region38: #{mlp_forward.1} parent=1 // pred_check
      _
    $region39: #{mlp_forward.1} parent=1 // pred_check_branch
      %714 = sbr.rel (0) target = $region41
    $region40: #{mlp_forward.1} parent=1 // pred_region
      %s716 = ssub.s32 32, 16
      %717 = vsyncadd [#allocation4], %s716
      %s719 = sshll.u32 [#allocation3], 4
      %s720 = int_to_ptr.vmem [resolvable:$true] %s719
      %722 = dma.vmem_to_hbm [thread:$0]  %s720, 16, %s9, [#allocation4]
    $region41: #{mlp_forward.1} parent=1 // pred_fallthru
      _
    // Predicated region
    $region42: #{mlp_forward.1} parent=1 // pred_check
      _
    $region43: #{mlp_forward.1} parent=1 // pred_check_branch
      %724 = sbr.rel (0) target = $region45
    $region44: #{mlp_forward.1} parent=1 // pred_region
      %725 = dma.done [#allocation4], 32
    $region45: #{mlp_forward.1} parent=1 // pred_fallthru
      _
    %726 = vsyncpa [#allocation4], 1

</llo_original>
